<compile_context>
chip_gen: v6e
topology: v6e:2x2x1
jax: 0.10.0
libtpu: 0.0.40
codegen_flags: <defaults>
</compile_context>

<pallas_src>
import functools

import numpy as np
import jax
import jax.numpy as jnp
from jax import lax
from jax.experimental import pallas as pl
from jax.experimental.pallas import tpu as pltpu


def fgm_kernel(x_ref, kcat_ref, gcat_ref, wmix_ref, bias_ref, o_ref):
    """x_ref:(1,R,HW) f32; kcat_ref:(HW,2HW) bf16 = [Re K | Im K];
    gcat_ref:(2HW,HW) bf16 = [Re G ; -Im G]; wmix_ref:(R,R) bf16 = kron(I_BB, W_conv);
    bias_ref:(R,1) f32; o_ref:(1,R,HW) f32."""
    dot = functools.partial(jnp.dot, preferred_element_type=jnp.float32)
    hw = o_ref.shape[-1]

    x = x_ref[0].astype(jnp.bfloat16)                 # cast on the VPU, not in XLA

    # ---- fft2 (real input): one MXU pass yields [Re Y | Im Y] ---------------
    f = dot(x, kcat_ref[...])                         # (R, 2HW) f32
    fr, fi = f[:, :hw], f[:, hw:]                     # lane-aligned (256) splits

    # ---- |Y| via a single guarded rsqrt (EUP slot); torch.angle(0) == 0 -----
    s = fr * fr + fi * fi                             # |Y|^2
    nz = s > 1e-30
    inv = lax.rsqrt(jnp.where(nz, s, 1.0))            # 1/|Y| where nz
    mag = s * inv                                     # |Y|  (== s <= 1e-30 where ~nz)

    # ---- 1x1 conv on |Y|: per-image (C,C)@(C,HW) channel mix + bias ---------
    mmag = dot(wmix_ref[...], mag.astype(jnp.bfloat16)) + bias_ref[...]

    # ---- Z = mmag * exp(i*angle(Y)) = Y * (mmag/|Y|);  Z = mmag when Y ~ 0 --
    ratio = mmag * inv
    zr = jnp.where(nz, fr * ratio, mmag).astype(jnp.bfloat16)
    zi = jnp.where(nz, fi * ratio, 0.0).astype(jnp.bfloat16)
    z = jnp.concatenate([zr, zi], axis=1)             # (R, 2HW), 256-lane boundary

    # ---- ifft2 real part: Zr@Gr - Zi@Gi accumulated in one MXU pass ---------
    o_ref[0] = dot(z, gcat_ref[...]).astype(o_ref.dtype)


def _dft_complex(n, sign, norm):
    k = np.arange(n)
    return np.exp(sign * 2j * np.pi * np.outer(k, k) / n) / norm


def _round_up(x, m):
    return -(-x // m) * m


def fgm_block(x, conv_w, conv_b):
    """x: (B, C, H, W) f32. conv_w: (C, C) squeezed 1x1 kernel. conv_b: (C,)."""
    B, C, H, W = x.shape
    HW = H * W

    # Fold batch onto the sublane/M axis up to ~256 rows per grid step.
    BB = max(1, min(B, 256 // max(C, 1)))
    nB = -(-B // BB)
    Bp = nB * BB
    R = BB * C

    # --- host-side constants (glue; torch.fft has no Pallas primitive) -------
    FH = _dft_complex(H, -1.0, 1.0)
    FW = _dft_complex(W, -1.0, 1.0)
    GH = _dft_complex(H, +1.0, float(H))
    GW = _dft_complex(W, +1.0, float(W))
    K = np.kron(FH, FW)              # Y_flat = X_flat @ K        (fft2)
    G = np.kron(GH, GW)              # x_flat = Re(Z_flat @ G)    (ifft2)
    kcat = jnp.asarray(np.concatenate([K.real, K.imag], axis=1), jnp.bfloat16)   # (HW, 2HW)
    gcat = jnp.asarray(np.concatenate([G.real, -G.imag], axis=0), jnp.bfloat16)  # (2HW, HW)
    wmix = jnp.asarray(np.kron(np.eye(BB), np.asarray(conv_w, np.float64)),
                       jnp.bfloat16)                                             # (R, R)
    bias = jnp.asarray(np.tile(np.asarray(conv_b, np.float64), BB)[:, None],
                       jnp.float32)                                              # (R, 1)

    # --- input layout plumbing (free row-major reshape; pad only if needed) --
    xp = x.astype(jnp.float32)
    if Bp != B:
        xp = jnp.concatenate([xp, jnp.zeros((Bp - B, C, H, W), xp.dtype)], axis=0)
    x2 = xp.reshape(nB, R, HW)       # stays f32; bf16 cast happens in-kernel

    # --- VMEM budget: actual buffers + headroom instead of a blanket 32 MiB --
    dft_bytes = (kcat.size + gcat.size) * 2
    const_bytes = dft_bytes + wmix.size * 2 + R * 128 * 4      # bias lane-padded
    single_buffer = dft_bytes > (4 << 20)        # only worth it once constants are big
    const_mode = pl.Buffered(1) if single_buffer else None
    io_bytes = 2 * 2 * (R * HW * 4)                            # double-buffered in+out
    tmp_bytes = 12 * R * HW * 4                                # in-kernel f32 temporaries
    vmem_limit = int(min(64 << 20,
                         _round_up(io_bytes
                                   + (1 if single_buffer else 2) * const_bytes
                                   + tmp_bytes + (8 << 20), 1 << 20)))

    grid_spec = pltpu.PrefetchScalarGridSpec(
        num_scalar_prefetch=0,
        grid=(nB,),
        in_specs=[
            pl.BlockSpec((1, R, HW), lambda b: (b, 0, 0)),
            # Constant operands: index_map is constant -> fetched once; single-
            # buffered once they are large (halves their VMEM footprint).
            pl.BlockSpec((HW, 2 * HW), lambda b: (0, 0), pipeline_mode=const_mode),
            pl.BlockSpec((2 * HW, HW), lambda b: (0, 0), pipeline_mode=const_mode),
            pl.BlockSpec((R, R), lambda b: (0, 0), pipeline_mode=const_mode),
            pl.BlockSpec((R, 1), lambda b: (0, 0), pipeline_mode=const_mode),
        ],
        out_specs=pl.BlockSpec((1, R, HW), lambda b: (b, 0, 0)),
    )

    out2 = pl.pallas_call(
        fgm_kernel,
        out_shape=jax.ShapeDtypeStruct((nB, R, HW), jnp.float32),
        grid_spec=grid_spec,
        compiler_params=pltpu.CompilerParams(
            dimension_semantics=("parallel",),      # >=2 steps -> both v7x TCs
            vmem_limit_bytes=vmem_limit),
    )(x2, kcat, gcat, wmix, bias)

    return out2.reshape(Bp, C, H, W)[:B]


def fgm_reference(x, conv_w, conv_b):
    """Pure-JAX reference mirroring the PyTorch forward."""
    fft = jnp.fft.fft2(x, axes=(-2, -1))
    mag = jnp.abs(fft)
    ph = jnp.angle(fft)
    mmag = jnp.einsum('oc,bchw->bohw', conv_w, mag) + conv_b[None, :, None, None]
    z = (mmag * jnp.cos(ph)) + 1j * (mmag * jnp.sin(ph))
    return jnp.real(jnp.fft.ifft2(z, axes=(-2, -1)))


if __name__ == "__main__":
    vit_dim = 2                       # -> num_channels = 2 * vit_dim = 4
    B, C, H, W = 2, 2 * vit_dim, 16, 16

    key = jax.random.PRNGKey(0)
    kx, kw, kb = jax.random.split(key, 3)
    x = jax.random.normal(kx, (B, C, H, W), dtype=jnp.float32)
    # Deterministic synthetic parameters for the 1x1 Conv2d(C, C).
    conv_w = 0.1 * jax.random.normal(kw, (C, C), dtype=jnp.float32)
    conv_b = 0.1 * jax.random.normal(kb, (C,), dtype=jnp.float32)

    out = jax.block_until_ready(fgm_block(x, conv_w, conv_b))
    ref = jax.block_until_ready(fgm_reference(x, conv_w, conv_b))

    # bf16 MXU operands with f32 accumulation -> bf16-level tolerance.
    np.testing.assert_allclose(np.asarray(out), np.asarray(ref),
                               rtol=2e-2, atol=2e-2)
    print("KERNEL_OK")
</pallas_src>

<mosaic_0001>
module attributes {stable_mosaic.version = 11 : i64} {
  func.func @fgm_kernel(%arg0: i32, %arg1: memref<1x8x256xf32, #tpu.memory_space<vmem>>, %arg2: memref<256x512xbf16, #tpu.memory_space<vmem>>, %arg3: memref<512x256xbf16, #tpu.memory_space<vmem>>, %arg4: memref<8x8xbf16, #tpu.memory_space<vmem>>, %arg5: memref<8x1xf32, #tpu.memory_space<vmem>>, %arg6: memref<1x8x256xf32, #tpu.memory_space<vmem>>) attributes {dimension_semantics = [#tpu.dimension_semantics<parallel>], iteration_bounds = array<i64: 1>, scalar_prefetch = 0 : i64, scratch_operands = 0 : i64, tpu.core_type = #tpu.core_type<tc>, window_params = [{transform_indices = @transform_0, window_bounds = array<i64: 1, 8, 256>}, {pipeline_mode = #tpu.pipeline_mode<synchronous>, transform_indices = @transform_1, window_bounds = array<i64: 256, 512>}, {pipeline_mode = #tpu.pipeline_mode<synchronous>, transform_indices = @transform_2, window_bounds = array<i64: 512, 256>}, {pipeline_mode = #tpu.pipeline_mode<synchronous>, transform_indices = @transform_3, window_bounds = array<i64: 8, 8>}, {pipeline_mode = #tpu.pipeline_mode<synchronous>, transform_indices = @transform_4, window_bounds = array<i64: 8, 1>}, {transform_indices = @transform_5, window_bounds = array<i64: 1, 8, 256>}]} {
    %c0 = arith.constant 0 : index
    %c0_0 = arith.constant 0 : index
    %c0_1 = arith.constant 0 : index
    %0 = vector.load %arg1[%c0, %c0_0, %c0_1] : memref<1x8x256xf32, #tpu.memory_space<vmem>>, vector<1x8x256xf32>
    %1 = vector.shape_cast %0 : vector<1x8x256xf32> to vector<8x256xf32>
    %2 = arith.truncf %1 : vector<8x256xf32> to vector<8x256xbf16>
    %c0_2 = arith.constant 0 : index
    %c0_3 = arith.constant 0 : index
    %3 = vector.load %arg2[%c0_2, %c0_3] : memref<256x512xbf16, #tpu.memory_space<vmem>>, vector<256x512xbf16>
    %cst = arith.constant dense<0.000000e+00> : vector<8x512xf32>
    %4 = tpu.matmul %2, %3, %cst {dimension_numbers = #tpu.dot_dimension_numbers<[1], [0], [0], [1], [0, 0, 1, 1], [], []>} : vector<8x256xbf16>, vector<256x512xbf16>, vector<8x512xf32> -> vector<8x512xf32>
    %5 = vector.extract_strided_slice %4 {offsets = [0, 0], sizes = [8, 256], strides = [1, 1]} : vector<8x512xf32> to vector<8x256xf32>
    %6 = vector.extract_strided_slice %4 {offsets = [0, 256], sizes = [8, 256], strides = [1, 1]} : vector<8x512xf32> to vector<8x256xf32>
    %7 = arith.mulf %5, %5 : vector<8x256xf32>
    %8 = arith.mulf %6, %6 : vector<8x256xf32>
    %9 = arith.addf %7, %8 : vector<8x256xf32>
    %cst_4 = arith.constant 1.000000e-30 : f32
    %10 = vector.broadcast %cst_4 : f32 to vector<8x256xf32>
    %11 = arith.cmpf ogt, %9, %10 : vector<8x256xf32>
    %cst_5 = arith.constant 1.000000e+00 : f32
    %12 = vector.broadcast %cst_5 : f32 to vector<8x256xf32>
    %13 = arith.select %11, %9, %12 : vector<8x256xi1>, vector<8x256xf32>
    %14 = math.rsqrt %13 : vector<8x256xf32>
    %15 = arith.mulf %9, %14 : vector<8x256xf32>
    %c0_6 = arith.constant 0 : index
    %c0_7 = arith.constant 0 : index
    %16 = vector.load %arg4[%c0_6, %c0_7] : memref<8x8xbf16, #tpu.memory_space<vmem>>, vector<8x8xbf16>
    %17 = arith.truncf %15 : vector<8x256xf32> to vector<8x256xbf16>
    %cst_8 = arith.constant dense<0.000000e+00> : vector<8x256xf32>
    %18 = tpu.matmul %16, %17, %cst_8 {dimension_numbers = #tpu.dot_dimension_numbers<[1], [0], [0], [1], [0, 0, 1, 1], [], []>} : vector<8x8xbf16>, vector<8x256xbf16>, vector<8x256xf32> -> vector<8x256xf32>
    %c0_9 = arith.constant 0 : index
    %c0_10 = arith.constant 0 : index
    %19 = vector.load %arg5[%c0_9, %c0_10] : memref<8x1xf32, #tpu.memory_space<vmem>>, vector<8x1xf32>
    %20 = vector.broadcast %19 : vector<8x1xf32> to vector<8x256xf32>
    %21 = arith.addf %18, %20 : vector<8x256xf32>
    %22 = arith.mulf %21, %14 : vector<8x256xf32>
    %23 = arith.mulf %5, %22 : vector<8x256xf32>
    %24 = arith.select %11, %23, %21 : vector<8x256xi1>, vector<8x256xf32>
    %25 = arith.truncf %24 : vector<8x256xf32> to vector<8x256xbf16>
    %26 = arith.mulf %6, %22 : vector<8x256xf32>
    %cst_11 = arith.constant 0.000000e+00 : f32
    %27 = vector.broadcast %cst_11 : f32 to vector<8x256xf32>
    %28 = arith.select %11, %26, %27 : vector<8x256xi1>, vector<8x256xf32>
    %29 = arith.truncf %28 : vector<8x256xf32> to vector<8x256xbf16>
    %30 = tpu.concatenate %25, %29 in 1 : vector<8x256xbf16>, vector<8x256xbf16> -> vector<8x512xbf16>
    %c0_12 = arith.constant 0 : index
    %c0_13 = arith.constant 0 : index
    %31 = vector.load %arg3[%c0_12, %c0_13] : memref<512x256xbf16, #tpu.memory_space<vmem>>, vector<512x256xbf16>
    %cst_14 = arith.constant dense<0.000000e+00> : vector<8x256xf32>
    %32 = tpu.matmul %30, %31, %cst_14 {dimension_numbers = #tpu.dot_dimension_numbers<[1], [0], [0], [1], [0, 0, 1, 1], [], []>} : vector<8x512xbf16>, vector<512x256xbf16>, vector<8x256xf32> -> vector<8x256xf32>
    %c0_15 = arith.constant 0 : index
    %c0_16 = arith.constant 0 : index
    %c0_17 = arith.constant 0 : index
    %33 = vector.load %arg6[%c0_15, %c0_16, %c0_17] : memref<1x8x256xf32, #tpu.memory_space<vmem>>, vector<1x8x256xf32>
    %34 = vector.shape_cast %33 : vector<1x8x256xf32> to vector<8x256xf32>
    %35 = vector.shape_cast %32 : vector<8x256xf32> to vector<1x8x256xf32>
    tpu.vector_store %arg6[%c0_15, %c0_16, %c0_17], %35 {strides = array<i32>} : memref<1x8x256xf32, #tpu.memory_space<vmem>>, vector<1x8x256xf32>,
    return
  }
  func.func @transform_0(%arg0: i32) -> (i32, i32, i32) {
    %c0_i32 = arith.constant 0 : i32
    %c0_i32_0 = arith.constant 0 : i32
    %c0_i32_1 = arith.constant 0 : i32
    return %arg0, %c0_i32, %c0_i32_0 : i32, i32, i32
  }
  func.func @transform_1(%arg0: i32) -> (i32, i32) {
    %c0_i32 = arith.constant 0 : i32
    %c0_i32_0 = arith.constant 0 : i32
    %c0_i32_1 = arith.constant 0 : i32
    return %c0_i32, %c0_i32_0 : i32, i32
  }
  func.func @transform_2(%arg0: i32) -> (i32, i32) {
    %c0_i32 = arith.constant 0 : i32
    %c0_i32_0 = arith.constant 0 : i32
    %c0_i32_1 = arith.constant 0 : i32
    return %c0_i32, %c0_i32_0 : i32, i32
  }
  func.func @transform_3(%arg0: i32) -> (i32, i32) {
    %c0_i32 = arith.constant 0 : i32
    %c0_i32_0 = arith.constant 0 : i32
    %c0_i32_1 = arith.constant 0 : i32
    return %c0_i32, %c0_i32_0 : i32, i32
  }
  func.func @transform_4(%arg0: i32) -> (i32, i32) {
    %c0_i32 = arith.constant 0 : i32
    %c0_i32_0 = arith.constant 0 : i32
    %c0_i32_1 = arith.constant 0 : i32
    return %c0_i32, %c0_i32_0 : i32, i32
  }
  func.func @transform_5(%arg0: i32) -> (i32, i32, i32) {
    %c0_i32 = arith.constant 0 : i32
    %c0_i32_0 = arith.constant 0 : i32
    %c0_i32_1 = arith.constant 0 : i32
    return %arg0, %c0_i32, %c0_i32_0 : i32, i32, i32
  }
}

</mosaic_0001>

<llo_original>
// kernel: tpu_custom_call.1
$region0: #{tpu_custom_call.1}
  #allocation0 [shape = 'u32[]', space=smem, size = 0x4, offset = 0x4, fixed_abs, tag = 'smem constant byte address 0x4 - core index']
  #allocation1 [shape = 'u32[144,128]{1,0:T(1,128)}', space=vmem, size = 0x12000, scoped, tag = 'internal scratch']
  %s0 = inlined_call_operand.hbm [shape: f32[1,8,256], index: 0, kind: input, shape index: {}]
  %s1 = inlined_call_operand.hbm [shape: bf16[256,512], index: 1, kind: input, shape index: {}]
  %s2 = inlined_call_operand.hbm [shape: bf16[512,256], index: 2, kind: input, shape index: {}]
  %s3 = inlined_call_operand.vmem [shape: bf16[8,8], index: 3, kind: input, shape index: {}]
  %s4 = inlined_call_operand.vmem [shape: f32[8,1], index: 4, kind: input, shape index: {}]
  %s5 = inlined_call_operand.hbm [shape: f32[1,8,256], index: 5, kind: output, shape index: {}]
  %s6 = sld [smem:[#allocation0]]
  $region42: #{tpu_custom_call.1} parent=0
    _
  %s8 = ssub.s32 1, %s6
  %s9 = scalar_select 0, %s8, %s6
  $region1: #{tpu_custom_call.1} parent=0
    #allocation2 [shape = 'u8[8192]{0}', space=vmem, size = 0x2000, scoped, tag = 'input window, operand 0, single buffered']
    #allocation3 [shape = 's32[1]{0}', space=sflag, size = 0x4, scoped, tag = 'scoped memory for tpu_custom_call.1']
    #allocation4 [shape = 's32[1]{0}', space=sflag, size = 0x4, scoped, tag = 'scoped memory for tpu_custom_call.1']
    #allocation5 [shape = 'u8[262144]{0}', space=vmem, size = 0x40000, scoped, tag = 'input window, operand 1, single buffered']
    #allocation6 [shape = 's32[1]{0}', space=sflag, size = 0x4, scoped, tag = 'scoped memory for tpu_custom_call.1']
    #allocation7 [shape = 'u8[262144]{0}', space=vmem, size = 0x40000, scoped, tag = 'input window, operand 2, single buffered']
    #allocation8 [shape = 'u8[8192]{0}', space=vmem, size = 0x2000, scoped, tag = 'output window, operand 0, single buffered']
    %10 = vsyncpa [#allocation3], 0
    %11 = vsyncpa [#allocation6], 0
    %12 = vsyncpa [#allocation4], 0
    // Predicated region
    $region2: #{tpu_custom_call.1} parent=1 // pred_check
      _
    $region3: #{tpu_custom_call.1} parent=1 // pred_check_branch
      %14 = sbr.rel (0) target = $region5
    $region4: #{tpu_custom_call.1} parent=1 // pred_region
      %s16 = ssub.s32 256, 256
      %17 = vsyncadd [#allocation3], %s16
      %s19 = sshll.u32 [#allocation2], 4
      %s20 = int_to_ptr.vmem [resolvable:$true] %s19
      %22 = dma.hbm_to_vmem [thread:$0]  %s0, 256, %s20, [#allocation3]
    $region5: #{tpu_custom_call.1} parent=1 // pred_fallthru
      _
    // Predicated region
    $region6: #{tpu_custom_call.1} parent=1 // pred_check
      _
    $region7: #{tpu_custom_call.1} parent=1 // pred_check_branch
      %24 = sbr.rel (0) target = $region9
    $region8: #{tpu_custom_call.1} parent=1 // pred_region
      %s26 = ssub.s32 8192, 8192
      %27 = vsyncadd [#allocation6], %s26
      %s28 = sshll.u32 [#allocation5], 4
      %s29 = int_to_ptr.vmem [resolvable:$true] %s28
      %34 = dma.hbm_to_vmem [thread:$0]  %s1, 8192, %s29, [#allocation6], 256, 256, 16
    $region9: #{tpu_custom_call.1} parent=1 // pred_fallthru
      _
    // Predicated region
    $region10: #{tpu_custom_call.1} parent=1 // pred_check
      _
    $region11: #{tpu_custom_call.1} parent=1 // pred_check_branch
      %36 = sbr.rel (0) target = $region13
    $region12: #{tpu_custom_call.1} parent=1 // pred_region
      %s38 = ssub.s32 8192, 8192
      %39 = vsyncadd [#allocation6], %s38
      %s40 = sshll.u32 [#allocation7], 4
      %s41 = int_to_ptr.vmem [resolvable:$true] %s40
      %46 = dma.hbm_to_vmem [thread:$0]  %s2, 8192, %s41, [#allocation6], 128, 128, 8
    $region13: #{tpu_custom_call.1} parent=1 // pred_fallthru
      _
    // Predicated region
    $region14: #{tpu_custom_call.1} parent=1 // pred_check
      _
    $region15: #{tpu_custom_call.1} parent=1 // pred_check_branch
      %48 = sbr.rel (0) target = $region17
    $region16: #{tpu_custom_call.1} parent=1 // pred_region
      _
    $region17: #{tpu_custom_call.1} parent=1 // pred_fallthru
      _
    // Predicated region
    $region18: #{tpu_custom_call.1} parent=1 // pred_check
      _
    $region19: #{tpu_custom_call.1} parent=1 // pred_check_branch
      %50 = sbr.rel (0) target = $region21
    $region20: #{tpu_custom_call.1} parent=1 // pred_region
      _
    $region21: #{tpu_custom_call.1} parent=1 // pred_fallthru
      _
    // Predicated region
    $region22: #{tpu_custom_call.1} parent=1 // pred_check
      _
    $region23: #{tpu_custom_call.1} parent=1 // pred_check_branch
      %52 = sbr.rel (0) target = $region25
    $region24: #{tpu_custom_call.1} parent=1 // pred_region
      %53 = dma.done [#allocation3], 256
    $region25: #{tpu_custom_call.1} parent=1 // pred_fallthru
      _
    // Predicated region
    $region26: #{tpu_custom_call.1} parent=1 // pred_check
      _
    $region27: #{tpu_custom_call.1} parent=1 // pred_check_branch
      %55 = sbr.rel (0) target = $region29
    $region28: #{tpu_custom_call.1} parent=1 // pred_region
      %56 = dma.done [#allocation6], 8192
    $region29: #{tpu_custom_call.1} parent=1 // pred_fallthru
      _
    // Predicated region
    $region30: #{tpu_custom_call.1} parent=1 // pred_check
      _
    $region31: #{tpu_custom_call.1} parent=1 // pred_check_branch
      %58 = sbr.rel (0) target = $region33
    $region32: #{tpu_custom_call.1} parent=1 // pred_region
      %59 = dma.done [#allocation6], 8192
    $region33: #{tpu_custom_call.1} parent=1 // pred_fallthru
      _
    %v61 = vld [vmem:[#allocation2] sm:$0xff]
    %v62 = vld [vmem:[#allocation2 + $0x8] sm:$0xff]
    %v63 = vpack.c.bf16 %v61, %v61
    %v64 = vpack.c.bf16 %v62, %v62
    %v65 = vld [vmem:[#allocation5] sm:$0xff]
    %v66 = vld [vmem:[#allocation5 + $0x8] sm:$0xff]
    %v67 = vld [vmem:[#allocation5 + $0x10] sm:$0xff]
    %v68 = vld [vmem:[#allocation5 + $0x18] sm:$0xff]
    %v69 = vld [vmem:[#allocation5 + $0x20] sm:$0xff]
    %v70 = vld [vmem:[#allocation5 + $0x28] sm:$0xff]
    %v71 = vld [vmem:[#allocation5 + $0x30] sm:$0xff]
    %v72 = vld [vmem:[#allocation5 + $0x38] sm:$0xff]
    %v73 = vld [vmem:[#allocation5 + $0x40] sm:$0xff]
    %v74 = vld [vmem:[#allocation5 + $0x48] sm:$0xff]
    %v75 = vld [vmem:[#allocation5 + $0x50] sm:$0xff]
    %v76 = vld [vmem:[#allocation5 + $0x58] sm:$0xff]
    %v77 = vld [vmem:[#allocation5 + $0x60] sm:$0xff]
    %v78 = vld [vmem:[#allocation5 + $0x68] sm:$0xff]
    %v79 = vld [vmem:[#allocation5 + $0x70] sm:$0xff]
    %v80 = vld [vmem:[#allocation5 + $0x78] sm:$0xff]
    %v81 = vld [vmem:[#allocation5 + $0x80] sm:$0xff]
    %v82 = vld [vmem:[#allocation5 + $0x88] sm:$0xff]
    %v83 = vld [vmem:[#allocation5 + $0x90] sm:$0xff]
    %v84 = vld [vmem:[#allocation5 + $0x98] sm:$0xff]
    %v85 = vld [vmem:[#allocation5 + $0xa0] sm:$0xff]
    %v86 = vld [vmem:[#allocation5 + $0xa8] sm:$0xff]
    %v87 = vld [vmem:[#allocation5 + $0xb0] sm:$0xff]
    %v88 = vld [vmem:[#allocation5 + $0xb8] sm:$0xff]
    %v89 = vld [vmem:[#allocation5 + $0xc0] sm:$0xff]
    %v90 = vld [vmem:[#allocation5 + $0xc8] sm:$0xff]
    %v91 = vld [vmem:[#allocation5 + $0xd0] sm:$0xff]
    %v92 = vld [vmem:[#allocation5 + $0xd8] sm:$0xff]
    %v93 = vld [vmem:[#allocation5 + $0xe0] sm:$0xff]
    %v94 = vld [vmem:[#allocation5 + $0xe8] sm:$0xff]
    %v95 = vld [vmem:[#allocation5 + $0xf0] sm:$0xff]
    %v96 = vld [vmem:[#allocation5 + $0xf8] sm:$0xff]
    %v97 = vld [vmem:[#allocation5 + $0x100] sm:$0xff]
    %v98 = vld [vmem:[#allocation5 + $0x108] sm:$0xff]
    %v99 = vld [vmem:[#allocation5 + $0x110] sm:$0xff]
    %v100 = vld [vmem:[#allocation5 + $0x118] sm:$0xff]
    %v101 = vld [vmem:[#allocation5 + $0x120] sm:$0xff]
    %v102 = vld [vmem:[#allocation5 + $0x128] sm:$0xff]
    %v103 = vld [vmem:[#allocation5 + $0x130] sm:$0xff]
    %v104 = vld [vmem:[#allocation5 + $0x138] sm:$0xff]
    %v105 = vld [vmem:[#allocation5 + $0x140] sm:$0xff]
    %v106 = vld [vmem:[#allocation5 + $0x148] sm:$0xff]
    %v107 = vld [vmem:[#allocation5 + $0x150] sm:$0xff]
    %v108 = vld [vmem:[#allocation5 + $0x158] sm:$0xff]
    %v109 = vld [vmem:[#allocation5 + $0x160] sm:$0xff]
    %v110 = vld [vmem:[#allocation5 + $0x168] sm:$0xff]
    %v111 = vld [vmem:[#allocation5 + $0x170] sm:$0xff]
    %v112 = vld [vmem:[#allocation5 + $0x178] sm:$0xff]
    %v113 = vld [vmem:[#allocation5 + $0x180] sm:$0xff]
    %v114 = vld [vmem:[#allocation5 + $0x188] sm:$0xff]
    %v115 = vld [vmem:[#allocation5 + $0x190] sm:$0xff]
    %v116 = vld [vmem:[#allocation5 + $0x198] sm:$0xff]
    %v117 = vld [vmem:[#allocation5 + $0x1a0] sm:$0xff]
    %v118 = vld [vmem:[#allocation5 + $0x1a8] sm:$0xff]
    %v119 = vld [vmem:[#allocation5 + $0x1b0] sm:$0xff]
    %v120 = vld [vmem:[#allocation5 + $0x1b8] sm:$0xff]
    %v121 = vld [vmem:[#allocation5 + $0x1c0] sm:$0xff]
    %v122 = vld [vmem:[#allocation5 + $0x1c8] sm:$0xff]
    %v123 = vld [vmem:[#allocation5 + $0x1d0] sm:$0xff]
    %v124 = vld [vmem:[#allocation5 + $0x1d8] sm:$0xff]
    %v125 = vld [vmem:[#allocation5 + $0x1e0] sm:$0xff]
    %v126 = vld [vmem:[#allocation5 + $0x1e8] sm:$0xff]
    %v127 = vld [vmem:[#allocation5 + $0x1f0] sm:$0xff]
    %v128 = vld [vmem:[#allocation5 + $0x1f8] sm:$0xff]
    %v193 = vunpack.c.l.b16 %v65
    %v194 = vunpack.c.h.b16 %v65
    %v195 = vunpack.c.l.b16 %v66
    %v196 = vunpack.c.h.b16 %v66
    %v197 = vunpack.c.l.b16 %v67
    %v198 = vunpack.c.h.b16 %v67
    %v199 = vunpack.c.l.b16 %v68
    %v200 = vunpack.c.h.b16 %v68
    %v201 = vunpack.c.l.b16 %v69
    %v202 = vunpack.c.h.b16 %v69
    %v203 = vunpack.c.l.b16 %v70
    %v204 = vunpack.c.h.b16 %v70
    %v205 = vunpack.c.l.b16 %v71
    %v206 = vunpack.c.h.b16 %v71
    %v207 = vunpack.c.l.b16 %v72
    %v208 = vunpack.c.h.b16 %v72
    %v209 = vunpack.c.l.b16 %v73
    %v210 = vunpack.c.h.b16 %v73
    %v211 = vunpack.c.l.b16 %v74
    %v212 = vunpack.c.h.b16 %v74
    %v213 = vunpack.c.l.b16 %v75
    %v214 = vunpack.c.h.b16 %v75
    %v215 = vunpack.c.l.b16 %v76
    %v216 = vunpack.c.h.b16 %v76
    %v217 = vunpack.c.l.b16 %v77
    %v218 = vunpack.c.h.b16 %v77
    %v219 = vunpack.c.l.b16 %v78
    %v220 = vunpack.c.h.b16 %v78
    %v221 = vunpack.c.l.b16 %v79
    %v222 = vunpack.c.h.b16 %v79
    %v223 = vunpack.c.l.b16 %v80
    %v224 = vunpack.c.h.b16 %v80
    %v225 = vunpack.c.l.b16 %v81
    %v226 = vunpack.c.h.b16 %v81
    %v227 = vunpack.c.l.b16 %v82
    %v228 = vunpack.c.h.b16 %v82
    %v229 = vunpack.c.l.b16 %v83
    %v230 = vunpack.c.h.b16 %v83
    %v231 = vunpack.c.l.b16 %v84
    %v232 = vunpack.c.h.b16 %v84
    %v233 = vunpack.c.l.b16 %v85
    %v234 = vunpack.c.h.b16 %v85
    %v235 = vunpack.c.l.b16 %v86
    %v236 = vunpack.c.h.b16 %v86
    %v237 = vunpack.c.l.b16 %v87
    %v238 = vunpack.c.h.b16 %v87
    %v239 = vunpack.c.l.b16 %v88
    %v240 = vunpack.c.h.b16 %v88
    %v241 = vunpack.c.l.b16 %v89
    %v242 = vunpack.c.h.b16 %v89
    %v243 = vunpack.c.l.b16 %v90
    %v244 = vunpack.c.h.b16 %v90
    %v245 = vunpack.c.l.b16 %v91
    %v246 = vunpack.c.h.b16 %v91
    %v247 = vunpack.c.l.b16 %v92
    %v248 = vunpack.c.h.b16 %v92
    %v249 = vunpack.c.l.b16 %v93
    %v250 = vunpack.c.h.b16 %v93
    %v251 = vunpack.c.l.b16 %v94
    %v252 = vunpack.c.h.b16 %v94
    %v253 = vunpack.c.l.b16 %v95
    %v254 = vunpack.c.h.b16 %v95
    %v255 = vunpack.c.l.b16 %v96
    %v256 = vunpack.c.h.b16 %v96
    %v257 = vunpack.c.l.b16 %v97
    %v258 = vunpack.c.h.b16 %v97
    %v259 = vunpack.c.l.b16 %v98
    %v260 = vunpack.c.h.b16 %v98
    %v261 = vunpack.c.l.b16 %v99
    %v262 = vunpack.c.h.b16 %v99
    %v263 = vunpack.c.l.b16 %v100
    %v264 = vunpack.c.h.b16 %v100
    %v265 = vunpack.c.l.b16 %v101
    %v266 = vunpack.c.h.b16 %v101
    %v267 = vunpack.c.l.b16 %v102
    %v268 = vunpack.c.h.b16 %v102
    %v269 = vunpack.c.l.b16 %v103
    %v270 = vunpack.c.h.b16 %v103
    %v271 = vunpack.c.l.b16 %v104
    %v272 = vunpack.c.h.b16 %v104
    %v273 = vunpack.c.l.b16 %v105
    %v274 = vunpack.c.h.b16 %v105
    %v275 = vunpack.c.l.b16 %v106
    %v276 = vunpack.c.h.b16 %v106
    %v277 = vunpack.c.l.b16 %v107
    %v278 = vunpack.c.h.b16 %v107
    %v279 = vunpack.c.l.b16 %v108
    %v280 = vunpack.c.h.b16 %v108
    %v281 = vunpack.c.l.b16 %v109
    %v282 = vunpack.c.h.b16 %v109
    %v283 = vunpack.c.l.b16 %v110
    %v284 = vunpack.c.h.b16 %v110
    %v285 = vunpack.c.l.b16 %v111
    %v286 = vunpack.c.h.b16 %v111
    %v287 = vunpack.c.l.b16 %v112
    %v288 = vunpack.c.h.b16 %v112
    %v289 = vunpack.c.l.b16 %v113
    %v290 = vunpack.c.h.b16 %v113
    %v291 = vunpack.c.l.b16 %v114
    %v292 = vunpack.c.h.b16 %v114
    %v293 = vunpack.c.l.b16 %v115
    %v294 = vunpack.c.h.b16 %v115
    %v295 = vunpack.c.l.b16 %v116
    %v296 = vunpack.c.h.b16 %v116
    %v297 = vunpack.c.l.b16 %v117
    %v298 = vunpack.c.h.b16 %v117
    %v299 = vunpack.c.l.b16 %v118
    %v300 = vunpack.c.h.b16 %v118
    %v301 = vunpack.c.l.b16 %v119
    %v302 = vunpack.c.h.b16 %v119
    %v303 = vunpack.c.l.b16 %v120
    %v304 = vunpack.c.h.b16 %v120
    %v305 = vunpack.c.l.b16 %v121
    %v306 = vunpack.c.h.b16 %v121
    %v307 = vunpack.c.l.b16 %v122
    %v308 = vunpack.c.h.b16 %v122
    %v309 = vunpack.c.l.b16 %v123
    %v310 = vunpack.c.h.b16 %v123
    %v311 = vunpack.c.l.b16 %v124
    %v312 = vunpack.c.h.b16 %v124
    %v313 = vunpack.c.l.b16 %v125
    %v314 = vunpack.c.h.b16 %v125
    %v315 = vunpack.c.l.b16 %v126
    %v316 = vunpack.c.h.b16 %v126
    %v317 = vunpack.c.l.b16 %v127
    %v318 = vunpack.c.h.b16 %v127
    %v319 = vunpack.c.l.b16 %v128
    %v320 = vunpack.c.h.b16 %v128
    %v321 = vpack.c.b16 %v197, %v193
    %v322 = vpack.c.b16 %v198, %v194
    %v323 = vpack.c.b16 %v199, %v195
    %v324 = vpack.c.b16 %v200, %v196
    %v325 = vpack.c.b16 %v205, %v201
    %v326 = vpack.c.b16 %v206, %v202
    %v327 = vpack.c.b16 %v207, %v203
    %v328 = vpack.c.b16 %v208, %v204
    %v329 = vpack.c.b16 %v213, %v209
    %v330 = vpack.c.b16 %v214, %v210
    %v331 = vpack.c.b16 %v215, %v211
    %v332 = vpack.c.b16 %v216, %v212
    %v333 = vpack.c.b16 %v221, %v217
    %v334 = vpack.c.b16 %v222, %v218
    %v335 = vpack.c.b16 %v223, %v219
    %v336 = vpack.c.b16 %v224, %v220
    %v337 = vpack.c.b16 %v229, %v225
    %v338 = vpack.c.b16 %v230, %v226
    %v339 = vpack.c.b16 %v231, %v227
    %v340 = vpack.c.b16 %v232, %v228
    %v341 = vpack.c.b16 %v237, %v233
    %v342 = vpack.c.b16 %v238, %v234
    %v343 = vpack.c.b16 %v239, %v235
    %v344 = vpack.c.b16 %v240, %v236
    %v345 = vpack.c.b16 %v245, %v241
    %v346 = vpack.c.b16 %v246, %v242
    %v347 = vpack.c.b16 %v247, %v243
    %v348 = vpack.c.b16 %v248, %v244
    %v349 = vpack.c.b16 %v253, %v249
    %v350 = vpack.c.b16 %v254, %v250
    %v351 = vpack.c.b16 %v255, %v251
    %v352 = vpack.c.b16 %v256, %v252
    %v353 = vpack.c.b16 %v261, %v257
    %v354 = vpack.c.b16 %v262, %v258
    %v355 = vpack.c.b16 %v263, %v259
    %v356 = vpack.c.b16 %v264, %v260
    %v357 = vpack.c.b16 %v269, %v265
    %v358 = vpack.c.b16 %v270, %v266
    %v359 = vpack.c.b16 %v271, %v267
    %v360 = vpack.c.b16 %v272, %v268
    %v361 = vpack.c.b16 %v277, %v273
    %v362 = vpack.c.b16 %v278, %v274
    %v363 = vpack.c.b16 %v279, %v275
    %v364 = vpack.c.b16 %v280, %v276
    %v365 = vpack.c.b16 %v285, %v281
    %v366 = vpack.c.b16 %v286, %v282
    %v367 = vpack.c.b16 %v287, %v283
    %v368 = vpack.c.b16 %v288, %v284
    %v369 = vpack.c.b16 %v293, %v289
    %v370 = vpack.c.b16 %v294, %v290
    %v371 = vpack.c.b16 %v295, %v291
    %v372 = vpack.c.b16 %v296, %v292
    %v373 = vpack.c.b16 %v301, %v297
    %v374 = vpack.c.b16 %v302, %v298
    %v375 = vpack.c.b16 %v303, %v299
    %v376 = vpack.c.b16 %v304, %v300
    %v377 = vpack.c.b16 %v309, %v305
    %v378 = vpack.c.b16 %v310, %v306
    %v379 = vpack.c.b16 %v311, %v307
    %v380 = vpack.c.b16 %v312, %v308
    %v381 = vpack.c.b16 %v317, %v313
    %v382 = vpack.c.b16 %v318, %v314
    %v383 = vpack.c.b16 %v319, %v315
    %v384 = vpack.c.b16 %v320, %v316
    %449 = vmatprep.subr.bf16.mxu0 %v350
    %450 = vmatpush1.bf16.msra.mxu0 %v349
    %451 = vmatprep.subr.bf16.mxu0 %v346
    %452 = vmatpush1.bf16.msra.mxu0 %v345
    %453 = vmatprep.subr.bf16.mxu0 %v342
    %454 = vmatpush1.bf16.msra.mxu0 %v341
    %455 = vmatprep.subr.bf16.mxu0 %v338
    %456 = vmatpush1.bf16.msra.mxu0 %v337
    %457 = vmatprep.subr.bf16.mxu0 %v334
    %458 = vmatpush1.bf16.msra.mxu0 %v333
    %459 = vmatprep.subr.bf16.mxu0 %v330
    %460 = vmatpush1.bf16.msra.mxu0 %v329
    %461 = vmatprep.subr.bf16.mxu0 %v326
    %462 = vmatpush1.bf16.msra.mxu0 %v325
    %463 = vmatprep.subr.bf16.mxu0 %v322
    %464 = vmatpush1.bf16.msra.mxu0 %v321
    %465 = vmatprep.subr.bf16.mxu0 %v382
    %466 = vmatpush2.bf16.msra.mxu0 %v381
    %467 = vmatprep.subr.bf16.mxu0 %v378
    %468 = vmatpush2.bf16.msra.mxu0 %v377
    %469 = vmatprep.subr.bf16.mxu0 %v374
    %470 = vmatpush2.bf16.msra.mxu0 %v373
    %471 = vmatprep.subr.bf16.mxu0 %v370
    %472 = vmatpush2.bf16.msra.mxu0 %v369
    %473 = vmatprep.subr.bf16.mxu0 %v366
    %474 = vmatpush2.bf16.msra.mxu0 %v365
    %475 = vmatprep.subr.bf16.mxu0 %v362
    %476 = vmatpush2.bf16.msra.mxu0 %v361
    %477 = vmatprep.subr.bf16.mxu0 %v358
    %478 = vmatpush2.bf16.msra.mxu0 %v357
    %479 = vmatprep.subr.bf16.mxu0 %v354
    %480 = vmatpush2.bf16.msra.mxu0 %v353
    %481 = vmatprep.mubr.bf16.mxu0 %v64
    %482 = vmatmul.mubr.bf16.gmra.mxu0 %v63
    %v483 = vpop.f32.mrf.mxu0
    %v484 = vadd.f32 0.0, %v483
    %v485 = vpop.f32.mrf.mxu0
    %v486 = vadd.f32 0.0, %v485
    %v487 = vpop.f32.mrf.mxu0
    %v488 = vpop.f32.mrf.mxu0
    %489 = vdwg.mxu0
    %490 = vmatprep.subr.bf16.mxu0 %v352
    %491 = vmatpush1.bf16.msra.mxu0 %v351
    %492 = vmatprep.subr.bf16.mxu0 %v348
    %493 = vmatpush1.bf16.msra.mxu0 %v347
    %494 = vmatprep.subr.bf16.mxu0 %v344
    %495 = vmatpush1.bf16.msra.mxu0 %v343
    %496 = vmatprep.subr.bf16.mxu0 %v340
    %497 = vmatpush1.bf16.msra.mxu0 %v339
    %498 = vmatprep.subr.bf16.mxu0 %v336
    %499 = vmatpush1.bf16.msra.mxu0 %v335
    %500 = vmatprep.subr.bf16.mxu0 %v332
    %501 = vmatpush1.bf16.msra.mxu0 %v331
    %502 = vmatprep.subr.bf16.mxu0 %v328
    %503 = vmatpush1.bf16.msra.mxu0 %v327
    %504 = vmatprep.subr.bf16.mxu0 %v324
    %505 = vmatpush1.bf16.msra.mxu0 %v323
    %506 = vmatprep.subr.bf16.mxu0 %v384
    %507 = vmatpush2.bf16.msra.mxu0 %v383
    %508 = vmatprep.subr.bf16.mxu0 %v380
    %509 = vmatpush2.bf16.msra.mxu0 %v379
    %510 = vmatprep.subr.bf16.mxu0 %v376
    %511 = vmatpush2.bf16.msra.mxu0 %v375
    %512 = vmatprep.subr.bf16.mxu0 %v372
    %513 = vmatpush2.bf16.msra.mxu0 %v371
    %514 = vmatprep.subr.bf16.mxu0 %v368
    %515 = vmatpush2.bf16.msra.mxu0 %v367
    %516 = vmatprep.subr.bf16.mxu0 %v364
    %517 = vmatpush2.bf16.msra.mxu0 %v363
    %518 = vmatprep.subr.bf16.mxu0 %v360
    %519 = vmatpush2.bf16.msra.mxu0 %v359
    %520 = vmatprep.subr.bf16.mxu0 %v356
    %521 = vmatpush2.bf16.msra.mxu0 %v355
    %522 = vmatprep.mubr.bf16.mxu0 %v64
    %523 = vmatmul.mubr.bf16.gmra.mxu0 %v63
    %v524 = vpop.f32.mrf.mxu0
    %v525 = vadd.f32 0.0, %v524
    %v526 = vpop.f32.mrf.mxu0
    %v527 = vadd.f32 0.0, %v526
    %v528 = vpop.f32.mrf.mxu0
    %v529 = vpop.f32.mrf.mxu0
    %530 = vdwg.mxu0
    %v531 = vmul.f32 %v484, %v484
    %v532 = vmul.f32 %v486, %v486
    %v533 = vmul.f32 %v525, %v525
    %v534 = vmul.f32 %v527, %v527
    %v535 = vadd.f32 %v531, %v533
    %v536 = vadd.f32 %v532, %v534
    %vm537 = vcmp.gt.f32.partialorder %v535, 1e-30
    %vm538 = vcmp.gt.f32.partialorder %v536, 1e-30
    %v539 = vsel %vm537, %v535, 1.0
    %v540 = vsel %vm538, %v536, 1.0
    %v541 = vrsqrt.pop %v539
    %v542 = vrsqrt.pop %v540
    %v543 = vmul.f32 %v535, %v541
    %v544 = vmul.f32 %v536, %v542
    %v545 = vld [vmem:[%s3] sm:$0xf]
    %v546 = vpack.c.bf16 %v543, %v543
    %v547 = vpack.c.bf16 %v544, %v544
    %v548 = vld [vmem:[%s4] sm:$0xff]
    %550 = vset.pattern.permute.xlu0 0
    %551 = vperm.xlu0 %550, %v548
    %v552 = vpop.permute.xlu0 %551
    %vm554 = vcmask 64512
    %v556 = vsel %vm554, %v545, 0
    %vm558 = vcmask 1043456
    %v560 = vsel %vm558, %v546, 0
    %v563 = vsel %vm558, %v547, 0
    %565 = vmatprep.subr.bf16.mxu0 0
    %566 = vmatpush1.bf16.msra.mxu0 0
    %567 = vmatprep.subr.bf16.mxu0 0
    %568 = vmatpush1.bf16.msra.mxu0 0
    %569 = vmatprep.subr.bf16.mxu0 0
    %570 = vmatpush1.bf16.msra.mxu0 0
    %571 = vmatprep.subr.bf16.mxu0 0
    %572 = vmatpush1.bf16.msra.mxu0 0
    %573 = vmatprep.subr.bf16.mxu0 0
    %574 = vmatpush1.bf16.msra.mxu0 0
    %575 = vmatprep.subr.bf16.mxu0 0
    %576 = vmatpush1.bf16.msra.mxu0 0
    %577 = vmatprep.subr.bf16.mxu0 0
    %578 = vmatpush1.bf16.msra.mxu0 0
    %579 = vmatprep.subr.bf16.mxu0 %v563
    %580 = vmatpush1.bf16.msra.mxu0 %v560
    %581 = vmatprep.subr.bf16.mxu0 0
    %582 = vmatpush2.bf16.msra.mxu0 0
    %583 = vmatprep.subr.bf16.mxu0 0
    %584 = vmatpush2.bf16.msra.mxu0 0
    %585 = vmatprep.subr.bf16.mxu0 0
    %586 = vmatpush2.bf16.msra.mxu0 0
    %587 = vmatprep.subr.bf16.mxu0 0
    %588 = vmatpush2.bf16.msra.mxu0 0
    %589 = vmatprep.subr.bf16.mxu0 0
    %590 = vmatpush2.bf16.msra.mxu0 0
    %591 = vmatprep.subr.bf16.mxu0 0
    %592 = vmatpush2.bf16.msra.mxu0 0
    %593 = vmatprep.subr.bf16.mxu0 0
    %594 = vmatpush2.bf16.msra.mxu0 0
    %595 = vmatprep.subr.bf16.mxu0 0
    %596 = vmatpush2.bf16.msra.mxu0 0
    %597 = vmatprep.mubr.bf16.mxu0 0
    %598 = vmatmul.mubr.bf16.gmra.mxu0 %v556
    %v599 = vpop.f32.mrf.mxu0
    %v600 = vadd.f32 %v552, %v599
    %v601 = vpop.f32.mrf.mxu0
    %v602 = vadd.f32 %v552, %v601
    %v603 = vpop.f32.mrf.mxu0
    %v604 = vpop.f32.mrf.mxu0
    %605 = vdwg.mxu0
    %v606 = vmul.f32 %v600, %v541
    %v607 = vmul.f32 %v602, %v542
    %v608 = vmul.f32 %v484, %v606
    %v609 = vmul.f32 %v486, %v607
    %v610 = vsel %vm537, %v608, %v600
    %v611 = vsel %vm538, %v609, %v602
    %v612 = vpack.c.bf16 %v610, %v610
    %v613 = vpack.c.bf16 %v611, %v611
    %v614 = vmul.f32 %v525, %v606
    %v615 = vmul.f32 %v527, %v607
    %v616 = vsel %vm537, %v614, 0.0
    %v617 = vsel %vm538, %v615, 0.0
    %v618 = vpack.c.bf16 %v616, %v616
    %v619 = vpack.c.bf16 %v617, %v617
    %v620 = vld [vmem:[#allocation7] sm:$0xff]
    %v621 = vld [vmem:[#allocation7 + $0x8] sm:$0xff]
    %v622 = vld [vmem:[#allocation7 + $0x10] sm:$0xff]
    %v623 = vld [vmem:[#allocation7 + $0x18] sm:$0xff]
    %v624 = vld [vmem:[#allocation7 + $0x20] sm:$0xff]
    %v625 = vld [vmem:[#allocation7 + $0x28] sm:$0xff]
    %v626 = vld [vmem:[#allocation7 + $0x30] sm:$0xff]
    %v627 = vld [vmem:[#allocation7 + $0x38] sm:$0xff]
    %v628 = vld [vmem:[#allocation7 + $0x40] sm:$0xff]
    %v629 = vld [vmem:[#allocation7 + $0x48] sm:$0xff]
    %v630 = vld [vmem:[#allocation7 + $0x50] sm:$0xff]
    %v631 = vld [vmem:[#allocation7 + $0x58] sm:$0xff]
    %v632 = vld [vmem:[#allocation7 + $0x60] sm:$0xff]
    %v633 = vld [vmem:[#allocation7 + $0x68] sm:$0xff]
    %v634 = vld [vmem:[#allocation7 + $0x70] sm:$0xff]
    %v635 = vld [vmem:[#allocation7 + $0x78] sm:$0xff]
    %v636 = vld [vmem:[#allocation7 + $0x80] sm:$0xff]
    %v637 = vld [vmem:[#allocation7 + $0x88] sm:$0xff]
    %v638 = vld [vmem:[#allocation7 + $0x90] sm:$0xff]
    %v639 = vld [vmem:[#allocation7 + $0x98] sm:$0xff]
    %v640 = vld [vmem:[#allocation7 + $0xa0] sm:$0xff]
    %v641 = vld [vmem:[#allocation7 + $0xa8] sm:$0xff]
    %v642 = vld [vmem:[#allocation7 + $0xb0] sm:$0xff]
    %v643 = vld [vmem:[#allocation7 + $0xb8] sm:$0xff]
    %v644 = vld [vmem:[#allocation7 + $0xc0] sm:$0xff]
    %v645 = vld [vmem:[#allocation7 + $0xc8] sm:$0xff]
    %v646 = vld [vmem:[#allocation7 + $0xd0] sm:$0xff]
    %v647 = vld [vmem:[#allocation7 + $0xd8] sm:$0xff]
    %v648 = vld [vmem:[#allocation7 + $0xe0] sm:$0xff]
    %v649 = vld [vmem:[#allocation7 + $0xe8] sm:$0xff]
    %v650 = vld [vmem:[#allocation7 + $0xf0] sm:$0xff]
    %v651 = vld [vmem:[#allocation7 + $0xf8] sm:$0xff]
    %v652 = vld [vmem:[#allocation7 + $0x100] sm:$0xff]
    %v653 = vld [vmem:[#allocation7 + $0x108] sm:$0xff]
    %v654 = vld [vmem:[#allocation7 + $0x110] sm:$0xff]
    %v655 = vld [vmem:[#allocation7 + $0x118] sm:$0xff]
    %v656 = vld [vmem:[#allocation7 + $0x120] sm:$0xff]
    %v657 = vld [vmem:[#allocation7 + $0x128] sm:$0xff]
    %v658 = vld [vmem:[#allocation7 + $0x130] sm:$0xff]
    %v659 = vld [vmem:[#allocation7 + $0x138] sm:$0xff]
    %v660 = vld [vmem:[#allocation7 + $0x140] sm:$0xff]
    %v661 = vld [vmem:[#allocation7 + $0x148] sm:$0xff]
    %v662 = vld [vmem:[#allocation7 + $0x150] sm:$0xff]
    %v663 = vld [vmem:[#allocation7 + $0x158] sm:$0xff]
    %v664 = vld [vmem:[#allocation7 + $0x160] sm:$0xff]
    %v665 = vld [vmem:[#allocation7 + $0x168] sm:$0xff]
    %v666 = vld [vmem:[#allocation7 + $0x170] sm:$0xff]
    %v667 = vld [vmem:[#allocation7 + $0x178] sm:$0xff]
    %v668 = vld [vmem:[#allocation7 + $0x180] sm:$0xff]
    %v669 = vld [vmem:[#allocation7 + $0x188] sm:$0xff]
    %v670 = vld [vmem:[#allocation7 + $0x190] sm:$0xff]
    %v671 = vld [vmem:[#allocation7 + $0x198] sm:$0xff]
    %v672 = vld [vmem:[#allocation7 + $0x1a0] sm:$0xff]
    %v673 = vld [vmem:[#allocation7 + $0x1a8] sm:$0xff]
    %v674 = vld [vmem:[#allocation7 + $0x1b0] sm:$0xff]
    %v675 = vld [vmem:[#allocation7 + $0x1b8] sm:$0xff]
    %v676 = vld [vmem:[#allocation7 + $0x1c0] sm:$0xff]
    %v677 = vld [vmem:[#allocation7 + $0x1c8] sm:$0xff]
    %v678 = vld [vmem:[#allocation7 + $0x1d0] sm:$0xff]
    %v679 = vld [vmem:[#allocation7 + $0x1d8] sm:$0xff]
    %v680 = vld [vmem:[#allocation7 + $0x1e0] sm:$0xff]
    %v681 = vld [vmem:[#allocation7 + $0x1e8] sm:$0xff]
    %v682 = vld [vmem:[#allocation7 + $0x1f0] sm:$0xff]
    %v683 = vld [vmem:[#allocation7 + $0x1f8] sm:$0xff]
    %v748 = vunpack.c.l.b16 %v620
    %v749 = vunpack.c.h.b16 %v620
    %v750 = vunpack.c.l.b16 %v621
    %v751 = vunpack.c.h.b16 %v621
    %v752 = vunpack.c.l.b16 %v622
    %v753 = vunpack.c.h.b16 %v622
    %v754 = vunpack.c.l.b16 %v623
    %v755 = vunpack.c.h.b16 %v623
    %v756 = vunpack.c.l.b16 %v624
    %v757 = vunpack.c.h.b16 %v624
    %v758 = vunpack.c.l.b16 %v625
    %v759 = vunpack.c.h.b16 %v625
    %v760 = vunpack.c.l.b16 %v626
    %v761 = vunpack.c.h.b16 %v626
    %v762 = vunpack.c.l.b16 %v627
    %v763 = vunpack.c.h.b16 %v627
    %v764 = vunpack.c.l.b16 %v628
    %v765 = vunpack.c.h.b16 %v628
    %v766 = vunpack.c.l.b16 %v629
    %v767 = vunpack.c.h.b16 %v629
    %v768 = vunpack.c.l.b16 %v630
    %v769 = vunpack.c.h.b16 %v630
    %v770 = vunpack.c.l.b16 %v631
    %v771 = vunpack.c.h.b16 %v631
    %v772 = vunpack.c.l.b16 %v632
    %v773 = vunpack.c.h.b16 %v632
    %v774 = vunpack.c.l.b16 %v633
    %v775 = vunpack.c.h.b16 %v633
    %v776 = vunpack.c.l.b16 %v634
    %v777 = vunpack.c.h.b16 %v634
    %v778 = vunpack.c.l.b16 %v635
    %v779 = vunpack.c.h.b16 %v635
    %v780 = vunpack.c.l.b16 %v636
    %v781 = vunpack.c.h.b16 %v636
    %v782 = vunpack.c.l.b16 %v637
    %v783 = vunpack.c.h.b16 %v637
    %v784 = vunpack.c.l.b16 %v638
    %v785 = vunpack.c.h.b16 %v638
    %v786 = vunpack.c.l.b16 %v639
    %v787 = vunpack.c.h.b16 %v639
    %v788 = vunpack.c.l.b16 %v640
    %v789 = vunpack.c.h.b16 %v640
    %v790 = vunpack.c.l.b16 %v641
    %v791 = vunpack.c.h.b16 %v641
    %v792 = vunpack.c.l.b16 %v642
    %v793 = vunpack.c.h.b16 %v642
    %v794 = vunpack.c.l.b16 %v643
    %v795 = vunpack.c.h.b16 %v643
    %v796 = vunpack.c.l.b16 %v644
    %v797 = vunpack.c.h.b16 %v644
    %v798 = vunpack.c.l.b16 %v645
    %v799 = vunpack.c.h.b16 %v645
    %v800 = vunpack.c.l.b16 %v646
    %v801 = vunpack.c.h.b16 %v646
    %v802 = vunpack.c.l.b16 %v647
    %v803 = vunpack.c.h.b16 %v647
    %v804 = vunpack.c.l.b16 %v648
    %v805 = vunpack.c.h.b16 %v648
    %v806 = vunpack.c.l.b16 %v649
    %v807 = vunpack.c.h.b16 %v649
    %v808 = vunpack.c.l.b16 %v650
    %v809 = vunpack.c.h.b16 %v650
    %v810 = vunpack.c.l.b16 %v651
    %v811 = vunpack.c.h.b16 %v651
    %v812 = vunpack.c.l.b16 %v652
    %v813 = vunpack.c.h.b16 %v652
    %v814 = vunpack.c.l.b16 %v653
    %v815 = vunpack.c.h.b16 %v653
    %v816 = vunpack.c.l.b16 %v654
    %v817 = vunpack.c.h.b16 %v654
    %v818 = vunpack.c.l.b16 %v655
    %v819 = vunpack.c.h.b16 %v655
    %v820 = vunpack.c.l.b16 %v656
    %v821 = vunpack.c.h.b16 %v656
    %v822 = vunpack.c.l.b16 %v657
    %v823 = vunpack.c.h.b16 %v657
    %v824 = vunpack.c.l.b16 %v658
    %v825 = vunpack.c.h.b16 %v658
    %v826 = vunpack.c.l.b16 %v659
    %v827 = vunpack.c.h.b16 %v659
    %v828 = vunpack.c.l.b16 %v660
    %v829 = vunpack.c.h.b16 %v660
    %v830 = vunpack.c.l.b16 %v661
    %v831 = vunpack.c.h.b16 %v661
    %v832 = vunpack.c.l.b16 %v662
    %v833 = vunpack.c.h.b16 %v662
    %v834 = vunpack.c.l.b16 %v663
    %v835 = vunpack.c.h.b16 %v663
    %v836 = vunpack.c.l.b16 %v664
    %v837 = vunpack.c.h.b16 %v664
    %v838 = vunpack.c.l.b16 %v665
    %v839 = vunpack.c.h.b16 %v665
    %v840 = vunpack.c.l.b16 %v666
    %v841 = vunpack.c.h.b16 %v666
    %v842 = vunpack.c.l.b16 %v667
    %v843 = vunpack.c.h.b16 %v667
    %v844 = vunpack.c.l.b16 %v668
    %v845 = vunpack.c.h.b16 %v668
    %v846 = vunpack.c.l.b16 %v669
    %v847 = vunpack.c.h.b16 %v669
    %v848 = vunpack.c.l.b16 %v670
    %v849 = vunpack.c.h.b16 %v670
    %v850 = vunpack.c.l.b16 %v671
    %v851 = vunpack.c.h.b16 %v671
    %v852 = vunpack.c.l.b16 %v672
    %v853 = vunpack.c.h.b16 %v672
    %v854 = vunpack.c.l.b16 %v673
    %v855 = vunpack.c.h.b16 %v673
    %v856 = vunpack.c.l.b16 %v674
    %v857 = vunpack.c.h.b16 %v674
    %v858 = vunpack.c.l.b16 %v675
    %v859 = vunpack.c.h.b16 %v675
    %v860 = vunpack.c.l.b16 %v676
    %v861 = vunpack.c.h.b16 %v676
    %v862 = vunpack.c.l.b16 %v677
    %v863 = vunpack.c.h.b16 %v677
    %v864 = vunpack.c.l.b16 %v678
    %v865 = vunpack.c.h.b16 %v678
    %v866 = vunpack.c.l.b16 %v679
    %v867 = vunpack.c.h.b16 %v679
    %v868 = vunpack.c.l.b16 %v680
    %v869 = vunpack.c.h.b16 %v680
    %v870 = vunpack.c.l.b16 %v681
    %v871 = vunpack.c.h.b16 %v681
    %v872 = vunpack.c.l.b16 %v682
    %v873 = vunpack.c.h.b16 %v682
    %v874 = vunpack.c.l.b16 %v683
    %v875 = vunpack.c.h.b16 %v683
    %v876 = vpack.c.b16 %v750, %v748
    %v877 = vpack.c.b16 %v751, %v749
    %v878 = vpack.c.b16 %v754, %v752
    %v879 = vpack.c.b16 %v755, %v753
    %v880 = vpack.c.b16 %v758, %v756
    %v881 = vpack.c.b16 %v759, %v757
    %v882 = vpack.c.b16 %v762, %v760
    %v883 = vpack.c.b16 %v763, %v761
    %v884 = vpack.c.b16 %v766, %v764
    %v885 = vpack.c.b16 %v767, %v765
    %v886 = vpack.c.b16 %v770, %v768
    %v887 = vpack.c.b16 %v771, %v769
    %v888 = vpack.c.b16 %v774, %v772
    %v889 = vpack.c.b16 %v775, %v773
    %v890 = vpack.c.b16 %v778, %v776
    %v891 = vpack.c.b16 %v779, %v777
    %v892 = vpack.c.b16 %v782, %v780
    %v893 = vpack.c.b16 %v783, %v781
    %v894 = vpack.c.b16 %v786, %v784
    %v895 = vpack.c.b16 %v787, %v785
    %v896 = vpack.c.b16 %v790, %v788
    %v897 = vpack.c.b16 %v791, %v789
    %v898 = vpack.c.b16 %v794, %v792
    %v899 = vpack.c.b16 %v795, %v793
    %v900 = vpack.c.b16 %v798, %v796
    %v901 = vpack.c.b16 %v799, %v797
    %v902 = vpack.c.b16 %v802, %v800
    %v903 = vpack.c.b16 %v803, %v801
    %v904 = vpack.c.b16 %v806, %v804
    %v905 = vpack.c.b16 %v807, %v805
    %v906 = vpack.c.b16 %v810, %v808
    %v907 = vpack.c.b16 %v811, %v809
    %v908 = vpack.c.b16 %v814, %v812
    %v909 = vpack.c.b16 %v815, %v813
    %v910 = vpack.c.b16 %v818, %v816
    %v911 = vpack.c.b16 %v819, %v817
    %v912 = vpack.c.b16 %v822, %v820
    %v913 = vpack.c.b16 %v823, %v821
    %v914 = vpack.c.b16 %v826, %v824
    %v915 = vpack.c.b16 %v827, %v825
    %v916 = vpack.c.b16 %v830, %v828
    %v917 = vpack.c.b16 %v831, %v829
    %v918 = vpack.c.b16 %v834, %v832
    %v919 = vpack.c.b16 %v835, %v833
    %v920 = vpack.c.b16 %v838, %v836
    %v921 = vpack.c.b16 %v839, %v837
    %v922 = vpack.c.b16 %v842, %v840
    %v923 = vpack.c.b16 %v843, %v841
    %v924 = vpack.c.b16 %v846, %v844
    %v925 = vpack.c.b16 %v847, %v845
    %v926 = vpack.c.b16 %v850, %v848
    %v927 = vpack.c.b16 %v851, %v849
    %v928 = vpack.c.b16 %v854, %v852
    %v929 = vpack.c.b16 %v855, %v853
    %v930 = vpack.c.b16 %v858, %v856
    %v931 = vpack.c.b16 %v859, %v857
    %v932 = vpack.c.b16 %v862, %v860
    %v933 = vpack.c.b16 %v863, %v861
    %v934 = vpack.c.b16 %v866, %v864
    %v935 = vpack.c.b16 %v867, %v865
    %v936 = vpack.c.b16 %v870, %v868
    %v937 = vpack.c.b16 %v871, %v869
    %v938 = vpack.c.b16 %v874, %v872
    %v939 = vpack.c.b16 %v875, %v873
    %1004 = vmatprep.subr.bf16.mxu0 %v891
    %1005 = vmatpush1.bf16.msra.mxu0 %v890
    %1006 = vmatprep.subr.bf16.mxu0 %v889
    %1007 = vmatpush1.bf16.msra.mxu0 %v888
    %1008 = vmatprep.subr.bf16.mxu0 %v887
    %1009 = vmatpush1.bf16.msra.mxu0 %v886
    %1010 = vmatprep.subr.bf16.mxu0 %v885
    %1011 = vmatpush1.bf16.msra.mxu0 %v884
    %1012 = vmatprep.subr.bf16.mxu0 %v883
    %1013 = vmatpush1.bf16.msra.mxu0 %v882
    %1014 = vmatprep.subr.bf16.mxu0 %v881
    %1015 = vmatpush1.bf16.msra.mxu0 %v880
    %1016 = vmatprep.subr.bf16.mxu0 %v879
    %1017 = vmatpush1.bf16.msra.mxu0 %v878
    %1018 = vmatprep.subr.bf16.mxu0 %v877
    %1019 = vmatpush1.bf16.msra.mxu0 %v876
    %1020 = vmatprep.subr.bf16.mxu0 %v907
    %1021 = vmatpush2.bf16.msra.mxu0 %v906
    %1022 = vmatprep.subr.bf16.mxu0 %v905
    %1023 = vmatpush2.bf16.msra.mxu0 %v904
    %1024 = vmatprep.subr.bf16.mxu0 %v903
    %1025 = vmatpush2.bf16.msra.mxu0 %v902
    %1026 = vmatprep.subr.bf16.mxu0 %v901
    %1027 = vmatpush2.bf16.msra.mxu0 %v900
    %1028 = vmatprep.subr.bf16.mxu0 %v899
    %1029 = vmatpush2.bf16.msra.mxu0 %v898
    %1030 = vmatprep.subr.bf16.mxu0 %v897
    %1031 = vmatpush2.bf16.msra.mxu0 %v896
    %1032 = vmatprep.subr.bf16.mxu0 %v895
    %1033 = vmatpush2.bf16.msra.mxu0 %v894
    %1034 = vmatprep.subr.bf16.mxu0 %v893
    %1035 = vmatpush2.bf16.msra.mxu0 %v892
    %1036 = vmatprep.mubr.bf16.mxu0 %v613
    %1037 = vmatmul.mubr.bf16.gmra.mxu0 %v612
    %v1038 = vpop.f32.mrf.mxu0
    %v1039 = vadd.f32 0.0, %v1038
    %v1040 = vpop.f32.mrf.mxu0
    %v1041 = vadd.f32 0.0, %v1040
    %v1042 = vpop.f32.mrf.mxu0
    %v1043 = vpop.f32.mrf.mxu0
    %1044 = vdwg.mxu0
    %1045 = vmatprep.subr.bf16.mxu0 %v923
    %1046 = vmatpush1.bf16.msra.mxu0 %v922
    %1047 = vmatprep.subr.bf16.mxu0 %v921
    %1048 = vmatpush1.bf16.msra.mxu0 %v920
    %1049 = vmatprep.subr.bf16.mxu0 %v919
    %1050 = vmatpush1.bf16.msra.mxu0 %v918
    %1051 = vmatprep.subr.bf16.mxu0 %v917
    %1052 = vmatpush1.bf16.msra.mxu0 %v916
    %1053 = vmatprep.subr.bf16.mxu0 %v915
    %1054 = vmatpush1.bf16.msra.mxu0 %v914
    %1055 = vmatprep.subr.bf16.mxu0 %v913
    %1056 = vmatpush1.bf16.msra.mxu0 %v912
    %1057 = vmatprep.subr.bf16.mxu0 %v911
    %1058 = vmatpush1.bf16.msra.mxu0 %v910
    %1059 = vmatprep.subr.bf16.mxu0 %v909
    %1060 = vmatpush1.bf16.msra.mxu0 %v908
    %1061 = vmatprep.subr.bf16.mxu0 %v939
    %1062 = vmatpush2.bf16.msra.mxu0 %v938
    %1063 = vmatprep.subr.bf16.mxu0 %v937
    %1064 = vmatpush2.bf16.msra.mxu0 %v936
    %1065 = vmatprep.subr.bf16.mxu0 %v935
    %1066 = vmatpush2.bf16.msra.mxu0 %v934
    %1067 = vmatprep.subr.bf16.mxu0 %v933
    %1068 = vmatpush2.bf16.msra.mxu0 %v932
    %1069 = vmatprep.subr.bf16.mxu0 %v931
    %1070 = vmatpush2.bf16.msra.mxu0 %v930
    %1071 = vmatprep.subr.bf16.mxu0 %v929
    %1072 = vmatpush2.bf16.msra.mxu0 %v928
    %1073 = vmatprep.subr.bf16.mxu0 %v927
    %1074 = vmatpush2.bf16.msra.mxu0 %v926
    %1075 = vmatprep.subr.bf16.mxu0 %v925
    %1076 = vmatpush2.bf16.msra.mxu0 %v924
    %1077 = vmatprep.mubr.bf16.mxu0 %v619
    %1078 = vmatmul.mubr.bf16.gmra.mxu0 %v618
    %v1079 = vpop.f32.mrf.mxu0
    %v1080 = vadd.f32 %v1039, %v1079
    %v1081 = vpop.f32.mrf.mxu0
    %v1082 = vadd.f32 %v1041, %v1081
    %v1083 = vpop.f32.mrf.mxu0
    %v1084 = vpop.f32.mrf.mxu0
    %1085 = vdwg.mxu0
    %1086 = vst [vmem:[#allocation8] sm:$0xff] %v1080
    %1087 = vst [vmem:[#allocation8 + $0x8] sm:$0xff] %v1082
    // Predicated region
    $region34: #{tpu_custom_call.1} parent=1 // pred_check
      _
    $region35: #{tpu_custom_call.1} parent=1 // pred_check_branch
      %1089 = sbr.rel (0) target = $region37
    $region36: #{tpu_custom_call.1} parent=1 // pred_region
      %s1091 = ssub.s32 256, 256
      %1092 = vsyncadd [#allocation4], %s1091
      %s1094 = sshll.u32 [#allocation8], 4
      %s1095 = int_to_ptr.vmem [resolvable:$true] %s1094
      %1097 = dma.vmem_to_hbm [thread:$0]  %s1095, 256, %s5, [#allocation4]
    $region37: #{tpu_custom_call.1} parent=1 // pred_fallthru
      _
    // Predicated region
    $region38: #{tpu_custom_call.1} parent=1 // pred_check
      _
    $region39: #{tpu_custom_call.1} parent=1 // pred_check_branch
      %1099 = sbr.rel (0) target = $region41
    $region40: #{tpu_custom_call.1} parent=1 // pred_region
      %1100 = dma.done [#allocation4], 256
    $region41: #{tpu_custom_call.1} parent=1 // pred_fallthru
      _
    %1101 = vsyncpa [#allocation3], 1
    %1102 = vsyncpa [#allocation6], 1
    %1103 = vsyncpa [#allocation4], 1

</llo_original>
